<compile_context>
chip_gen: v6e
topology: v6e:2x2x1
jax: 0.10.0
libtpu: 0.0.40
codegen_flags: <defaults>
</compile_context>

<pallas_src>
import functools

import jax
import jax.numpy as jnp
from jax.experimental import pallas as pl
from jax.experimental.pallas import tpu as pltpu


def _round_up(x, m):
    return (x + m - 1) // m * m


def _vmem_capacity_bytes():
    """Physical VMEM of the current TPU generation (fallback: v7x 64 MiB/TC)."""
    try:
        info = pltpu.get_tpu_info()
        cap = getattr(info, "vmem_capacity_bytes", None)
        if cap:
            return int(cap)
    except Exception:
        pass
    return 64 << 20


def _gcn_kernel(text_ref, adj_ref, w_ref, b_ref, out_ref, *, compute_dtype):
    # text_ref: (bt, N, Fin)  f32 (unpadded; cast to compute dtype in-kernel)
    # adj_ref : (bt, N, N)    f32
    # w_ref   : (Fin, tn)     f32
    # b_ref   : (1, tn)       f32
    # out_ref : (bt, N, tn)   f32
    bt, n, fin = text_ref.shape
    tn = w_ref.shape[1]
    cdt = compute_dtype

    w = w_ref[...].astype(cdt)

    # hidden = text @ W : one MXU matmul over all bt*n rows (f32 accumulation).
    # The row merge is a free view: the wrapper guarantees bt == 1 or N % 8 == 0.
    t2d = text_ref[...].reshape(bt * n, fin).astype(cdt)
    hidden = jnp.dot(t2d, w, preferred_element_type=jnp.float32)       # (bt*n, tn)
    hidden = hidden.reshape(bt, n, tn)

    adj = adj_ref[...]                                                 # (bt, n, n) f32
    # denom = row-sum(adj) + 1, computed from the exact f32 adjacency (XLU reduce).
    denom = jnp.sum(adj, axis=-1, keepdims=True) + 1.0                 # (bt, n, 1)
    inv_denom = pl.reciprocal(denom, approx=True)                      # EUP slot, denom >= 1

    # agg = adj @ hidden : batched MXU matmul, f32 accumulation.
    agg = jnp.einsum("bij,bjf->bif", adj.astype(cdt), hidden.astype(cdt),
                     preferred_element_type=jnp.float32)               # (bt, n, tn)

    out_ref[...] = (agg * inv_denom + b_ref[...]).astype(out_ref.dtype)


@functools.partial(jax.jit, static_argnames=("compute_dtype",))
def graph_convolution(text, adj, weight, bias=None, *, compute_dtype=jnp.bfloat16):
    """Pallas GCN forward. text: [B,N,Fin], adj: [B,N,N], weight: [Fin,Fout], bias: [Fout]."""
    B, N, Fin = text.shape
    Fout = weight.shape[1]

    text = text.astype(jnp.float32)            # matches torch `text.to(float32)`
    adj = adj.astype(jnp.float32)
    weight = weight.astype(jnp.float32)
    if bias is None:
        bias2d = jnp.zeros((1, Fout), jnp.float32)
    else:
        bias2d = bias.astype(jnp.float32).reshape(1, Fout)

    cap = _vmem_capacity_bytes()
    budget = cap * 3 // 4

    def step_bytes(bt, tn):
        # double-buffered input/output blocks + grid-invariant weight/bias (once).
        return (2 * bt * N * Fin * 4            # text blocks
                + 2 * bt * N * N * 4            # adj blocks
                + 2 * bt * N * tn * 4           # out blocks
                + Fin * tn * 4                  # weight (constant index_map)
                + tn * 4)                       # bias

    # ---- batch block selection (no forced >=2-step split) --------------------
    if N % 8 != 0:
        # TODO(synk): N not a multiple of 8 falls back to bt=1 so the in-kernel
        # (bt*N, Fin) row merge stays a free view; a per-batch 2-D matmul path
        # could recover MXU rows for such N.
        bt = 1
    else:
        bt = min(B, max(1, 512 // N))           # target ~512 MXU rows per step
        while bt > 1 and step_bytes(bt, Fout) > budget:
            bt -= 1
        # Prefer an exact divisor of B near the target (avoids padded batches).
        d = next((c for c in range(bt, 0, -1) if B % c == 0), 1)
        if d * 2 >= bt:
            bt = d
        # Grow along divisors while VMEM allows (pure win on single-TC chips).
        while bt < B and B % bt == 0 and B % (bt * 2) == 0 \
                and step_bytes(bt * 2, Fout) <= budget:
            bt *= 2

    B_pad = _round_up(B, bt)
    if B_pad != B:
        # Padded batches have zero adj/text -> denom 1, output = bias; sliced off.
        text = jnp.pad(text, ((0, B_pad - B), (0, 0), (0, 0)))
        adj = jnp.pad(adj, ((0, B_pad - B), (0, 0), (0, 0)))
    num_b_steps = B_pad // bt

    # ---- Fout-tile axis (v7x: feed the second TensorCore when B fits one step) -
    if num_b_steps == 1 and Fout % 256 == 0:
        tn = Fout // 2
    else:
        tn = Fout
    nj = Fout // tn

    need = step_bytes(bt, tn)
    vmem_limit = int(min(max(need * 5 // 4 + (4 << 20), 32 << 20), cap * 9 // 10))

    kernel = functools.partial(_gcn_kernel, compute_dtype=jnp.dtype(compute_dtype))

    out = pl.pallas_call(
        kernel,
        out_shape=jax.ShapeDtypeStruct((B_pad, N, Fout), jnp.float32),
        grid_spec=pltpu.PrefetchScalarGridSpec(
            num_scalar_prefetch=0,
            grid=(num_b_steps, nj),
            in_specs=[
                pl.BlockSpec((bt, N, Fin), lambda b, j: (b, 0, 0)),   # j-invariant
                pl.BlockSpec((bt, N, N), lambda b, j: (b, 0, 0)),     # j-invariant
                pl.BlockSpec((Fin, tn), lambda b, j: (0, j)),
                pl.BlockSpec((1, tn), lambda b, j: (0, j)),
            ],
            out_specs=pl.BlockSpec((bt, N, tn), lambda b, j: (b, 0, j)),
        ),
        compiler_params=pltpu.CompilerParams(
            dimension_semantics=("parallel", "parallel"),
            vmem_limit_bytes=vmem_limit,
        ),
    )(text, adj, weight, bias2d)

    return out if B_pad == B else out[:B]


def _reference(text, adj, weight, bias):
    text = text.astype(jnp.float32)
    hidden = jnp.matmul(text, weight)
    denom = jnp.sum(adj, axis=2, keepdims=True) + 1.0
    out = jnp.matmul(adj, hidden) / denom
    return out + bias


if __name__ == "__main__":
    # Small shapes consistent with the module: batch=2, seq(nodes)=8,
    # in_features=32, out_features=32.
    B, N, Fin, Fout = 2, 8, 32, 32

    key = jax.random.PRNGKey(0)
    k_text, k_adj, k_w, k_b = jax.random.split(key, 4)

    text = jax.random.normal(k_text, (B, N, Fin), dtype=jnp.float32)
    adj_raw = jax.random.uniform(k_adj, (B, N, N), dtype=jnp.float32)
    adj = (adj_raw > 0.5).astype(jnp.float32)   # 0/1 adjacency (exact in bf16)

    weight = jax.random.normal(k_w, (Fin, Fout), dtype=jnp.float32) * 0.1
    bias = jax.random.normal(k_b, (Fout,), dtype=jnp.float32) * 0.1

    out = graph_convolution(text, adj, weight, bias)
    out = jax.block_until_ready(out)

    ref = _reference(text, adj, weight, bias)
    assert out.shape == ref.shape == (B, N, Fout)
    max_err = float(jnp.max(jnp.abs(out - ref)))
    # bf16 MXU operands + approx reciprocal -> compare against f32 ref with a
    # commensurate tolerance (use compute_dtype=jnp.float32 for full precision).
    assert jnp.allclose(out, ref, atol=2e-2, rtol=2e-2), f"max_err={max_err}"

    print("KERNEL_OK")
</pallas_src>

<mosaic_0001>
module attributes {stable_mosaic.version = 11 : i64} {
  func.func @_gcn_kernel(%arg0: i32, %arg1: i32, %arg2: memref<2x8x32xf32, #tpu.memory_space<vmem>>, %arg3: memref<2x8x8xf32, #tpu.memory_space<vmem>>, %arg4: memref<32x32xf32, #tpu.memory_space<vmem>>, %arg5: memref<1x32xf32, #tpu.memory_space<vmem>>, %arg6: memref<2x8x32xf32, #tpu.memory_space<vmem>>) attributes {dimension_semantics = [#tpu.dimension_semantics<parallel>, #tpu.dimension_semantics<parallel>], iteration_bounds = array<i64: 1, 1>, scalar_prefetch = 0 : i64, scratch_operands = 0 : i64, tpu.core_type = #tpu.core_type<tc>, window_params = [{transform_indices = @transform_0, window_bounds = array<i64: 2, 8, 32>}, {transform_indices = @transform_1, window_bounds = array<i64: 2, 8, 8>}, {transform_indices = @transform_2, window_bounds = array<i64: 32, 32>}, {transform_indices = @transform_3, window_bounds = array<i64: 1, 32>}, {transform_indices = @transform_4, window_bounds = array<i64: 2, 8, 32>}]} {
    %c0 = arith.constant 0 : index
    %c0_0 = arith.constant 0 : index
    %0 = vector.load %arg4[%c0, %c0_0] : memref<32x32xf32, #tpu.memory_space<vmem>>, vector<32x32xf32>
    %1 = arith.truncf %0 : vector<32x32xf32> to vector<32x32xbf16>
    %c0_1 = arith.constant 0 : index
    %c0_2 = arith.constant 0 : index
    %c0_3 = arith.constant 0 : index
    %2 = vector.load %arg2[%c0_1, %c0_2, %c0_3] : memref<2x8x32xf32, #tpu.memory_space<vmem>>, vector<2x8x32xf32>
    %3 = vector.shape_cast %2 : vector<2x8x32xf32> to vector<16x32xf32>
    %4 = arith.truncf %3 : vector<16x32xf32> to vector<16x32xbf16>
    %cst = arith.constant dense<0.000000e+00> : vector<16x32xf32>
    %5 = tpu.matmul %4, %1, %cst {dimension_numbers = #tpu.dot_dimension_numbers<[1], [0], [0], [1], [0, 0, 1, 1], [], []>} : vector<16x32xbf16>, vector<32x32xbf16>, vector<16x32xf32> -> vector<16x32xf32>
    %6 = vector.shape_cast %5 : vector<16x32xf32> to vector<2x8x32xf32>
    %c0_4 = arith.constant 0 : index
    %c0_5 = arith.constant 0 : index
    %c0_6 = arith.constant 0 : index
    %7 = vector.load %arg3[%c0_4, %c0_5, %c0_6] : memref<2x8x8xf32, #tpu.memory_space<vmem>>, vector<2x8x8xf32>
    %cst_7 = arith.constant dense<0.000000e+00> : vector<2x8xf32>
    %8 = vector.multi_reduction <add>, %7, %cst_7 [2] : vector<2x8x8xf32> to vector<2x8xf32>
    %9 = vector.shape_cast %8 : vector<2x8xf32> to vector<2x8x1xf32>
    %cst_8 = arith.constant 1.000000e+00 : f32
    %10 = vector.broadcast %cst_8 : f32 to vector<2x8x1xf32>
    %11 = arith.addf %9, %10 : vector<2x8x1xf32>
    %12 = tpu.reciprocal %11 {approx = true} : vector<2x8x1xf32> -> vector<2x8x1xf32>
    %13 = arith.truncf %7 : vector<2x8x8xf32> to vector<2x8x8xbf16>
    %14 = arith.truncf %6 : vector<2x8x32xf32> to vector<2x8x32xbf16>
    "tpu.trace_start"() <{level = 10 : i32, message = "bij,bjf->bif"}> : () -> ()
    %cst_9 = arith.constant dense<0.000000e+00> : vector<2x8x32xf32>
    %15 = tpu.matmul %13, %14, %cst_9 {dimension_numbers = #tpu.dot_dimension_numbers<[2], [1], [1], [2], [0, 0, 0, 1, 1, 2], [0], [0]>} : vector<2x8x8xbf16>, vector<2x8x32xbf16>, vector<2x8x32xf32> -> vector<2x8x32xf32>
    "tpu.trace_stop"() : () -> ()
    %16 = vector.broadcast %12 : vector<2x8x1xf32> to vector<2x8x32xf32>
    %17 = arith.mulf %15, %16 : vector<2x8x32xf32>
    %c0_10 = arith.constant 0 : index
    %c0_11 = arith.constant 0 : index
    %18 = vector.load %arg5[%c0_10, %c0_11] : memref<1x32xf32, #tpu.memory_space<vmem>>, vector<1x32xf32>
    %19 = vector.shape_cast %18 : vector<1x32xf32> to vector<1x1x32xf32>
    %20 = vector.broadcast %19 : vector<1x1x32xf32> to vector<2x8x32xf32>
    %21 = arith.addf %17, %20 : vector<2x8x32xf32>
    %c0_12 = arith.constant 0 : index
    %c0_13 = arith.constant 0 : index
    %c0_14 = arith.constant 0 : index
    %22 = vector.load %arg6[%c0_12, %c0_13, %c0_14] : memref<2x8x32xf32, #tpu.memory_space<vmem>>, vector<2x8x32xf32>
    tpu.vector_store %arg6[%c0_12, %c0_13, %c0_14], %21 {strides = array<i32>} : memref<2x8x32xf32, #tpu.memory_space<vmem>>, vector<2x8x32xf32>,
    return
  }
  func.func @transform_0(%arg0: i32, %arg1: i32) -> (i32, i32, i32) {
    %c0_i32 = arith.constant 0 : i32
    %c0_i32_0 = arith.constant 0 : i32
    %c0_i32_1 = arith.constant 0 : i32
    return %arg0, %c0_i32, %c0_i32_0 : i32, i32, i32
  }
  func.func @transform_1(%arg0: i32, %arg1: i32) -> (i32, i32, i32) {
    %c0_i32 = arith.constant 0 : i32
    %c0_i32_0 = arith.constant 0 : i32
    %c0_i32_1 = arith.constant 0 : i32
    return %arg0, %c0_i32, %c0_i32_0 : i32, i32, i32
  }
  func.func @transform_2(%arg0: i32, %arg1: i32) -> (i32, i32) {
    %c0_i32 = arith.constant 0 : i32
    %c0_i32_0 = arith.constant 0 : i32
    return %c0_i32, %arg1 : i32, i32
  }
  func.func @transform_3(%arg0: i32, %arg1: i32) -> (i32, i32) {
    %c0_i32 = arith.constant 0 : i32
    %c0_i32_0 = arith.constant 0 : i32
    return %c0_i32, %arg1 : i32, i32
  }
  func.func @transform_4(%arg0: i32, %arg1: i32) -> (i32, i32, i32) {
    %c0_i32 = arith.constant 0 : i32
    %c0_i32_0 = arith.constant 0 : i32
    return %arg0, %c0_i32, %arg1 : i32, i32, i32
  }
}

</mosaic_0001>

<llo_original>
// kernel: graph_convolution.1
$region0: #{graph_convolution.1}
  #allocation0 [shape = 'u32[]', space=smem, size = 0x4, offset = 0x4, fixed_abs, tag = 'smem constant byte address 0x4 - core index']
  #allocation1 [shape = 'u32[144,128]{1,0:T(1,128)}', space=vmem, size = 0x12000, scoped, tag = 'internal scratch']
  %s0 = inlined_call_operand.hbm [shape: f32[2,8,32], index: 0, kind: input, shape index: {}]
  %s1 = inlined_call_operand.hbm [shape: f32[2,8,8], index: 1, kind: input, shape index: {}]
  %s2 = inlined_call_operand.hbm [shape: f32[32,32], index: 2, kind: input, shape index: {}]
  %s3 = inlined_call_operand.vmem [shape: f32[1,32], index: 3, kind: input, shape index: {}]
  %s4 = inlined_call_operand.hbm [shape: f32[2,8,32], index: 4, kind: output, shape index: {}]
  %s5 = sld [smem:[#allocation0]]
  $region38: #{graph_convolution.1} parent=0
    _
  %s7 = ssub.s32 1, %s5
  %s8 = scalar_select 0, %s7, %s5
  $region1: #{graph_convolution.1} parent=0
    #allocation2 [shape = 'u8[8192]{0}', space=vmem, size = 0x2000, scoped, tag = 'input window, operand 0, single buffered']
    #allocation3 [shape = 's32[1]{0}', space=sflag, size = 0x4, scoped, tag = 'scoped memory for graph_convolution.1']
    #allocation4 [shape = 's32[1]{0}', space=sflag, size = 0x4, scoped, tag = 'scoped memory for graph_convolution.1']
    #allocation5 [shape = 'u8[8192]{0}', space=vmem, size = 0x2000, scoped, tag = 'input window, operand 1, single buffered']
    #allocation6 [shape = 's32[1]{0}', space=sflag, size = 0x4, scoped, tag = 'scoped memory for graph_convolution.1']
    #allocation7 [shape = 'u8[16384]{0}', space=vmem, size = 0x4000, scoped, tag = 'input window, operand 2, single buffered']
    #allocation8 [shape = 'u8[8192]{0}', space=vmem, size = 0x2000, scoped, tag = 'output window, operand 0, single buffered']
    %9 = vsyncpa [#allocation3], 0
    %10 = vsyncpa [#allocation6], 0
    %11 = vsyncpa [#allocation4], 0
    // Predicated region
    $region2: #{graph_convolution.1} parent=1 // pred_check
      _
    $region3: #{graph_convolution.1} parent=1 // pred_check_branch
      %13 = sbr.rel (0) target = $region5
    $region4: #{graph_convolution.1} parent=1 // pred_region
      %s15 = ssub.s32 256, 256
      %16 = vsyncadd [#allocation3], %s15
      %s17 = sshll.u32 [#allocation2], 4
      %s18 = int_to_ptr.vmem [resolvable:$true] %s17
      %23 = dma.hbm_to_vmem [thread:$0]  %s0, 256, %s18, [#allocation3], 128, 128, 8
    $region5: #{graph_convolution.1} parent=1 // pred_fallthru
      _
    // Predicated region
    $region6: #{graph_convolution.1} parent=1 // pred_check
      _
    $region7: #{graph_convolution.1} parent=1 // pred_check_branch
      %25 = sbr.rel (0) target = $region9
    $region8: #{graph_convolution.1} parent=1 // pred_region
      %s27 = ssub.s32 256, 256
      %28 = vsyncadd [#allocation6], %s27
      %s29 = sshll.u32 [#allocation5], 4
      %s30 = int_to_ptr.vmem [resolvable:$true] %s29
      %35 = dma.hbm_to_vmem [thread:$0]  %s1, 256, %s30, [#allocation6], 128, 128, 8
    $region9: #{graph_convolution.1} parent=1 // pred_fallthru
      _
    // Predicated region
    $region10: #{graph_convolution.1} parent=1 // pred_check
      _
    $region11: #{graph_convolution.1} parent=1 // pred_check_branch
      %37 = sbr.rel (0) target = $region13
    $region12: #{graph_convolution.1} parent=1 // pred_region
      %s39 = ssub.s32 512, 512
      %40 = vsyncadd [#allocation6], %s39
      %s41 = sshll.u32 [#allocation7], 4
      %s42 = int_to_ptr.vmem [resolvable:$true] %s41
      %47 = dma.hbm_to_vmem [thread:$0]  %s2, 512, %s42, [#allocation6], 128, 128, 8
    $region13: #{graph_convolution.1} parent=1 // pred_fallthru
      _
    // Predicated region
    $region14: #{graph_convolution.1} parent=1 // pred_check
      _
    $region15: #{graph_convolution.1} parent=1 // pred_check_branch
      %49 = sbr.rel (0) target = $region17
    $region16: #{graph_convolution.1} parent=1 // pred_region
      _
    $region17: #{graph_convolution.1} parent=1 // pred_fallthru
      _
    // Predicated region
    $region18: #{graph_convolution.1} parent=1 // pred_check
      _
    $region19: #{graph_convolution.1} parent=1 // pred_check_branch
      %51 = sbr.rel (0) target = $region21
    $region20: #{graph_convolution.1} parent=1 // pred_region
      %52 = dma.done [#allocation3], 256
    $region21: #{graph_convolution.1} parent=1 // pred_fallthru
      _
    // Predicated region
    $region22: #{graph_convolution.1} parent=1 // pred_check
      _
    $region23: #{graph_convolution.1} parent=1 // pred_check_branch
      %54 = sbr.rel (0) target = $region25
    $region24: #{graph_convolution.1} parent=1 // pred_region
      %55 = dma.done [#allocation6], 256
    $region25: #{graph_convolution.1} parent=1 // pred_fallthru
      _
    // Predicated region
    $region26: #{graph_convolution.1} parent=1 // pred_check
      _
    $region27: #{graph_convolution.1} parent=1 // pred_check_branch
      %57 = sbr.rel (0) target = $region29
    $region28: #{graph_convolution.1} parent=1 // pred_region
      %58 = dma.done [#allocation6], 512
    $region29: #{graph_convolution.1} parent=1 // pred_fallthru
      _
    %v60 = vld [vmem:[#allocation7] sm:$0xff]
    %v61 = vld [vmem:[#allocation7 + $0x8] sm:$0xff]
    %v62 = vld [vmem:[#allocation7 + $0x10] sm:$0xff]
    %v63 = vld [vmem:[#allocation7 + $0x18] sm:$0xff]
    %v64 = vpack.c.bf16 %v61, %v60
    %v65 = vpack.c.bf16 %v63, %v62
    %v66 = vld [vmem:[#allocation2] sm:$0xff]
    %v67 = vld [vmem:[#allocation2 + $0x8] sm:$0xff]
    %v68 = vpack.c.bf16 %v67, %v66
    %vm69 = vcmask 261120
    %v71 = vsel %vm69, %v68, 0
    %73 = vmatprep.subr.bf16.mxu0 0
    %74 = vmatpush1.bf16.msra.mxu0 0
    %75 = vmatprep.subr.bf16.mxu0 0
    %76 = vmatpush1.bf16.msra.mxu0 0
    %77 = vmatprep.subr.bf16.mxu0 0
    %78 = vmatpush1.bf16.msra.mxu0 0
    %79 = vmatprep.subr.bf16.mxu0 0
    %80 = vmatpush1.bf16.msra.mxu0 0
    %81 = vmatprep.subr.bf16.mxu0 0
    %82 = vmatpush1.bf16.msra.mxu0 0
    %83 = vmatprep.subr.bf16.mxu0 0
    %84 = vmatpush1.bf16.msra.mxu0 0
    %85 = vmatprep.subr.bf16.mxu0 0
    %86 = vmatpush1.bf16.msra.mxu0 %v65
    %87 = vmatprep.subr.bf16.mxu0 0
    %88 = vmatpush1.bf16.msra.mxu0 %v64
    %89 = vmatprep.subr.bf16.mxu0 0
    %90 = vmatpush2.bf16.msra.mxu0 0
    %91 = vmatprep.subr.bf16.mxu0 0
    %92 = vmatpush2.bf16.msra.mxu0 0
    %93 = vmatprep.subr.bf16.mxu0 0
    %94 = vmatpush2.bf16.msra.mxu0 0
    %95 = vmatprep.subr.bf16.mxu0 0
    %96 = vmatpush2.bf16.msra.mxu0 0
    %97 = vmatprep.subr.bf16.mxu0 0
    %98 = vmatpush2.bf16.msra.mxu0 0
    %99 = vmatprep.subr.bf16.mxu0 0
    %100 = vmatpush2.bf16.msra.mxu0 0
    %101 = vmatprep.subr.bf16.mxu0 0
    %102 = vmatpush2.bf16.msra.mxu0 0
    %103 = vmatprep.subr.bf16.mxu0 0
    %104 = vmatpush2.bf16.msra.mxu0 0
    %105 = vmatprep.mubr.bf16.mxu0 0
    %106 = vmatmul.mubr.bf16.gmra.mxu0 %v71
    %v107 = vpop.f32.mrf.mxu0
    %v108 = vadd.f32 0.0, %v107
    %v109 = vpop.f32.mrf.mxu0
    %v110 = vpop.f32.mrf.mxu0
    %v111 = vadd.f32 0.0, %v110
    %v112 = vpop.f32.mrf.mxu0
    %113 = vdwg.mxu0
    %v114 = vld [vmem:[#allocation5] sm:$0xff]
    %v115 = vld [vmem:[#allocation5 + $0x8] sm:$0xff]
    %vm116 = vcmask 64512
    %v117 = vsel %vm116, %v114, 0.0
    %118 = vadd.xlane.f32.xlu0 %v117
    %v119 = vpop.xlane.xlu0 %118
    %v120 = vsel %vm116, %v115, 0.0
    %121 = vadd.xlane.f32.xlu0 %v120
    %v122 = vpop.xlane.xlu0 %121
    %v123 = vadd.f32 %v119, 1.0
    %v124 = vadd.f32 %v122, 1.0
    %v125 = vrcp.pop %v123
    %v126 = vrcp.pop %v124
    %v127 = vpack.c.bf16 %v114, %v114
    %v128 = vpack.c.bf16 %v115, %v115
    %v129 = vpack.c.bf16 %v108, %v108
    %v130 = vpack.c.bf16 %v111, %v111
    %v132 = vsel %vm116, %v127, 0
    %vm134 = vcmask 1043456
    %v136 = vsel %vm134, %v129, 0
    %138 = vmatprep.subr.bf16.mxu0 0
    %139 = vmatpush1.bf16.msra.mxu0 0
    %140 = vmatprep.subr.bf16.mxu0 0
    %141 = vmatpush1.bf16.msra.mxu0 0
    %142 = vmatprep.subr.bf16.mxu0 0
    %143 = vmatpush1.bf16.msra.mxu0 0
    %144 = vmatprep.subr.bf16.mxu0 0
    %145 = vmatpush1.bf16.msra.mxu0 0
    %146 = vmatprep.subr.bf16.mxu0 0
    %147 = vmatpush1.bf16.msra.mxu0 0
    %148 = vmatprep.subr.bf16.mxu0 0
    %149 = vmatpush1.bf16.msra.mxu0 0
    %150 = vmatprep.subr.bf16.mxu0 0
    %151 = vmatpush1.bf16.msra.mxu0 0
    %152 = vmatprep.subr.bf16.mxu0 0
    %153 = vmatpush1.bf16.msra.mxu0 %v136
    %154 = vmatprep.subr.bf16.mxu0 0
    %155 = vmatpush2.bf16.msra.mxu0 0
    %156 = vmatprep.subr.bf16.mxu0 0
    %157 = vmatpush2.bf16.msra.mxu0 0
    %158 = vmatprep.subr.bf16.mxu0 0
    %159 = vmatpush2.bf16.msra.mxu0 0
    %160 = vmatprep.subr.bf16.mxu0 0
    %161 = vmatpush2.bf16.msra.mxu0 0
    %162 = vmatprep.subr.bf16.mxu0 0
    %163 = vmatpush2.bf16.msra.mxu0 0
    %164 = vmatprep.subr.bf16.mxu0 0
    %165 = vmatpush2.bf16.msra.mxu0 0
    %166 = vmatprep.subr.bf16.mxu0 0
    %167 = vmatpush2.bf16.msra.mxu0 0
    %168 = vmatprep.subr.bf16.mxu0 0
    %169 = vmatpush2.bf16.msra.mxu0 0
    %170 = vmatprep.mubr.bf16.mxu0 0
    %171 = vmatmul.mubr.bf16.gmra.mxu0 %v132
    %v172 = vpop.f32.mrf.mxu0
    %v173 = vadd.f32 0.0, %v172
    %v174 = vpop.f32.mrf.mxu0
    %v175 = vpop.f32.mrf.mxu0
    %v176 = vpop.f32.mrf.mxu0
    %177 = vdwg.mxu0
    %v179 = vsel %vm116, %v128, 0
    %v182 = vsel %vm134, %v130, 0
    %184 = vmatprep.subr.bf16.mxu0 0
    %185 = vmatpush1.bf16.msra.mxu0 0
    %186 = vmatprep.subr.bf16.mxu0 0
    %187 = vmatpush1.bf16.msra.mxu0 0
    %188 = vmatprep.subr.bf16.mxu0 0
    %189 = vmatpush1.bf16.msra.mxu0 0
    %190 = vmatprep.subr.bf16.mxu0 0
    %191 = vmatpush1.bf16.msra.mxu0 0
    %192 = vmatprep.subr.bf16.mxu0 0
    %193 = vmatpush1.bf16.msra.mxu0 0
    %194 = vmatprep.subr.bf16.mxu0 0
    %195 = vmatpush1.bf16.msra.mxu0 0
    %196 = vmatprep.subr.bf16.mxu0 0
    %197 = vmatpush1.bf16.msra.mxu0 0
    %198 = vmatprep.subr.bf16.mxu0 0
    %199 = vmatpush1.bf16.msra.mxu0 %v182
    %200 = vmatprep.subr.bf16.mxu0 0
    %201 = vmatpush2.bf16.msra.mxu0 0
    %202 = vmatprep.subr.bf16.mxu0 0
    %203 = vmatpush2.bf16.msra.mxu0 0
    %204 = vmatprep.subr.bf16.mxu0 0
    %205 = vmatpush2.bf16.msra.mxu0 0
    %206 = vmatprep.subr.bf16.mxu0 0
    %207 = vmatpush2.bf16.msra.mxu0 0
    %208 = vmatprep.subr.bf16.mxu0 0
    %209 = vmatpush2.bf16.msra.mxu0 0
    %210 = vmatprep.subr.bf16.mxu0 0
    %211 = vmatpush2.bf16.msra.mxu0 0
    %212 = vmatprep.subr.bf16.mxu0 0
    %213 = vmatpush2.bf16.msra.mxu0 0
    %214 = vmatprep.subr.bf16.mxu0 0
    %215 = vmatpush2.bf16.msra.mxu0 0
    %216 = vmatprep.mubr.bf16.mxu0 0
    %217 = vmatmul.mubr.bf16.gmra.mxu0 %v179
    %v218 = vpop.f32.mrf.mxu0
    %v219 = vadd.f32 0.0, %v218
    %v220 = vpop.f32.mrf.mxu0
    %v221 = vpop.f32.mrf.mxu0
    %v222 = vpop.f32.mrf.mxu0
    %223 = vdwg.mxu0
    %v224 = vmul.f32 %v173, %v125
    %v225 = vmul.f32 %v219, %v126
    %v226 = vld [vmem:[%s3] sm:$0x1]
    %v228 = vlaneseq
    %v229 = vshrl.u32 %v228, 7
    %v230 = vsub.s32 0, %v229
    %v231 = vrot.slane %v226, %v230
    %v233 = vadd.f32 %v224, %v231
    %v234 = vadd.f32 %v225, %v231
    %235 = vst.msk [vmem:[#allocation8] sm:$0xff] %vm69, %v233
    %236 = vst.msk [vmem:[#allocation8 + $0x8] sm:$0xff] %vm69, %v234
    // Predicated region
    $region30: #{graph_convolution.1} parent=1 // pred_check
      _
    $region31: #{graph_convolution.1} parent=1 // pred_check_branch
      %238 = sbr.rel (0) target = $region33
    $region32: #{graph_convolution.1} parent=1 // pred_region
      %s240 = ssub.s32 256, 256
      %241 = vsyncadd [#allocation4], %s240
      %s242 = sshll.u32 [#allocation8], 4
      %s243 = int_to_ptr.vmem [resolvable:$true] %s242
      %248 = dma.vmem_to_hbm [thread:$0]  %s243, 256, %s4, [#allocation4], 128, 128, 8
    $region33: #{graph_convolution.1} parent=1 // pred_fallthru
      _
    // Predicated region
    $region34: #{graph_convolution.1} parent=1 // pred_check
      _
    $region35: #{graph_convolution.1} parent=1 // pred_check_branch
      %250 = sbr.rel (0) target = $region37
    $region36: #{graph_convolution.1} parent=1 // pred_region
      %251 = dma.done [#allocation4], 256
    $region37: #{graph_convolution.1} parent=1 // pred_fallthru
      _
    %252 = vsyncpa [#allocation3], 1
    %253 = vsyncpa [#allocation6], 1
    %254 = vsyncpa [#allocation4], 1

</llo_original>
